<compile_context>
chip_gen: v6e
topology: v6e:2x2x1
jax: 0.10.0
libtpu: 0.0.40
codegen_flags: <defaults>
</compile_context>

<pallas_src>
import math

import jax
import jax.numpy as jnp
import numpy as np
from jax import lax
from jax.experimental import pallas as pl
from jax.experimental.pallas import tpu as pltpu

_LN_EPS = 1e-5


def _proj_ln_kernel(xw_ref, wp_ref, bp_ref, gp_ref, hp_ref, o_ref):
    """out = LayerNorm_over_channels(Wp @ x + bp) on a lane-dense (C, lanes) slab."""
    xw = xw_ref[...]                                                    # (C, L_blk) f32
    proj = jnp.dot(wp_ref[...], xw,
                   preferred_element_type=jnp.float32) + bp_ref[...]   # (C, L_blk)
    mu = jnp.mean(proj, axis=0, keepdims=True)
    d = proj - mu
    var = jnp.mean(d * d, axis=0, keepdims=True)
    o_ref[...] = (d * lax.rsqrt(var + _LN_EPS) * gp_ref[...]
                  + hp_ref[...]).astype(o_ref.dtype)


def _default_num_blocks(n_groups):
    """1 grid step on single-TensorCore chips (v5e/v6e); 2 parallel steps on v7x."""
    try:
        kind = jax.devices()[0].device_kind.lower()
    except Exception:
        kind = ""
    if n_groups % 2 == 0 and ("v7" in kind or "tpu7" in kind or "tpu v7" in kind):
        return 2
    return 1


def channel_attention_forward(x, params, *, inter=30, sequence_num=None, num_blocks=None):
    """x: (B, O, C, S) float32.  params: PyTorch-layout weights [out,in], biases/LN (C,).

    `inter` / `sequence_num` only parameterize the attention branch, which is
    mathematically a no-op on the module output (softmax row-sums are exactly 1);
    they are accepted for API parity with the PyTorch module.
    """
    del inter, sequence_num
    B, O, C, S = x.shape
    G = B * O
    S_pad = ((S + 127) // 128) * 128          # lane-dense sequence axis
    L = G * S_pad

    if num_blocks is None:
        num_blocks = _default_num_blocks(G)
    if G % num_blocks != 0:
        num_blocks = 1
    lane_block = (G // num_blocks) * S_pad

    # Lane-folded slab: (C, G*S_pad) with groups folded into the lane axis next to the
    # zero-padded sequence.  Host-side pad/transpose is layout plumbing only.
    xg = jnp.pad(x.astype(jnp.float32).reshape(G, C, S),
                 ((0, 0), (0, 0), (0, S_pad - S)))
    xw = jnp.transpose(xg, (1, 0, 2)).reshape(C, L)                     # (C, G*S_pad)

    col = lambda v: jnp.asarray(v, jnp.float32).reshape(C, 1)

    def const(shape):
        return pl.BlockSpec(shape, lambda i: (0,) * len(shape))

    slab_spec = pl.BlockSpec((C, lane_block), lambda i: (0, i))

    out_w = pl.pallas_call(
        _proj_ln_kernel,
        out_shape=jax.ShapeDtypeStruct((C, L), x.dtype),
        grid_spec=pltpu.PrefetchScalarGridSpec(
            num_scalar_prefetch=0,
            grid=(num_blocks,),
            in_specs=[
                slab_spec,                       # x slab (lane-dense)
                const((C, C)),                   # Wp
                const((C, 1)),                   # bp
                const((C, 1)), const((C, 1)),    # LayerNorm gamma / beta
            ],
            out_specs=slab_spec,                 # lane-dense output: unmasked vst
        ),
        compiler_params=pltpu.CompilerParams(
            dimension_semantics=("parallel",),
            vmem_limit_bytes=32 * 1024 * 1024),
    )(xw,
      jnp.asarray(params["wp"], jnp.float32), col(params["bp"]),
      col(params["ln_p_w"]), col(params["ln_p_b"]))

    out = out_w.reshape(C, G, S_pad).transpose(1, 0, 2)[:, :, :S]
    return out.reshape(B, O, C, S)


def _reference(x, params, *, inter, sequence_num):
    """Pure-JAX mirror of the FULL PyTorch forward (eval mode), attention included."""
    B, O, C, S = x.shape
    extract = int(sequence_num / inter)

    def branch(t, w, b, gamma, beta):              # Linear + LayerNorm over last dim
        y = t @ w.T + b
        mu = jnp.mean(y, axis=-1, keepdims=True)
        var = jnp.mean((y - mu) ** 2, axis=-1, keepdims=True)
        return (y - mu) / jnp.sqrt(var + _LN_EPS) * gamma + beta

    temp = jnp.transpose(x, (0, 1, 3, 2))          # b o s c
    tq = jnp.transpose(branch(temp, params["wq"], params["bq"],
                              params["ln_q_w"], params["ln_q_b"]), (0, 1, 3, 2))
    tk = jnp.transpose(branch(temp, params["wk"], params["bk"],
                              params["ln_k_w"], params["ln_k_b"]), (0, 1, 3, 2))

    n_pool = (S - inter) // inter + 1
    cq = tq[..., :n_pool * inter].reshape(B, O, C, n_pool, inter).mean(-1)
    ck = tk[..., :n_pool * inter].reshape(B, O, C, n_pool, inter).mean(-1)

    atten = jnp.einsum("bocs,boms->bocm", cq, ck) / (extract ** 0.5)
    score = jax.nn.softmax(atten, axis=-1)
    out = jnp.einsum("bocs,bocm->bocs", x, score)

    out = jnp.transpose(out, (0, 1, 3, 2))
    out = branch(out, params["wp"], params["bp"], params["ln_p_w"], params["ln_p_b"])
    return jnp.transpose(out, (0, 1, 3, 2))


if __name__ == "__main__":
    B, O, C = 2, 4, 14            # the module hard-codes 14 channels (nn.Linear(14, 14))
    inter = 30
    S = 120                       # sequence_num; extract_sequence = 4, pooled length = 4

    key = jax.random.PRNGKey(0)
    ks = jax.random.split(key, 13)

    def xavier(k, shape):
        std = math.sqrt(2.0 / (shape[0] + shape[1]))
        return std * jax.random.normal(k, shape, jnp.float32)

    params = {
        "wq": xavier(ks[0], (C, C)), "bq": 0.05 * jax.random.normal(ks[1], (C,), jnp.float32),
        "wk": xavier(ks[2], (C, C)), "bk": 0.05 * jax.random.normal(ks[3], (C,), jnp.float32),
        "wp": xavier(ks[4], (C, C)), "bp": 0.05 * jax.random.normal(ks[5], (C,), jnp.float32),
        "ln_q_w": 1.0 + 0.1 * jax.random.normal(ks[6], (C,), jnp.float32),
        "ln_q_b": 0.1 * jax.random.normal(ks[7], (C,), jnp.float32),
        "ln_k_w": 1.0 + 0.1 * jax.random.normal(ks[8], (C,), jnp.float32),
        "ln_k_b": 0.1 * jax.random.normal(ks[9], (C,), jnp.float32),
        "ln_p_w": 1.0 + 0.1 * jax.random.normal(ks[10], (C,), jnp.float32),
        "ln_p_b": 0.1 * jax.random.normal(ks[11], (C,), jnp.float32),
    }
    x = jax.random.normal(ks[12], (B, O, C, S), jnp.float32)

    out = channel_attention_forward(x, params, inter=inter, sequence_num=S)
    out = jax.block_until_ready(out)

    ref = _reference(x, params, inter=inter, sequence_num=S)
    np.testing.assert_allclose(np.asarray(out), np.asarray(ref), rtol=1e-4, atol=1e-4)

    print("KERNEL_OK")
</pallas_src>

<mosaic_0001>
module attributes {stable_mosaic.version = 11 : i64} {
  func.func @_proj_ln_kernel(%arg0: i32, %arg1: memref<14x1024xf32, #tpu.memory_space<vmem>>, %arg2: memref<14x14xf32, #tpu.memory_space<vmem>>, %arg3: memref<14x1xf32, #tpu.memory_space<vmem>>, %arg4: memref<14x1xf32, #tpu.memory_space<vmem>>, %arg5: memref<14x1xf32, #tpu.memory_space<vmem>>, %arg6: memref<14x1024xf32, #tpu.memory_space<vmem>>) attributes {dimension_semantics = [#tpu.dimension_semantics<parallel>], iteration_bounds = array<i64: 1>, scalar_prefetch = 0 : i64, scratch_operands = 0 : i64, tpu.core_type = #tpu.core_type<tc>, window_params = [{transform_indices = @transform_0, window_bounds = array<i64: 14, 1024>}, {pipeline_mode = #tpu.pipeline_mode<synchronous>, transform_indices = @transform_1, window_bounds = array<i64: 14, 14>}, {pipeline_mode = #tpu.pipeline_mode<synchronous>, transform_indices = @transform_2, window_bounds = array<i64: 14, 1>}, {pipeline_mode = #tpu.pipeline_mode<synchronous>, transform_indices = @transform_3, window_bounds = array<i64: 14, 1>}, {pipeline_mode = #tpu.pipeline_mode<synchronous>, transform_indices = @transform_4, window_bounds = array<i64: 14, 1>}, {transform_indices = @transform_5, window_bounds = array<i64: 14, 1024>}]} {
    %c0 = arith.constant 0 : index
    %c0_0 = arith.constant 0 : index
    %0 = vector.load %arg1[%c0, %c0_0] : memref<14x1024xf32, #tpu.memory_space<vmem>>, vector<14x1024xf32>
    %c0_1 = arith.constant 0 : index
    %c0_2 = arith.constant 0 : index
    %1 = vector.load %arg2[%c0_1, %c0_2] : memref<14x14xf32, #tpu.memory_space<vmem>>, vector<14x14xf32>
    %cst = arith.constant dense<0.000000e+00> : vector<14x1024xf32>
    %2 = tpu.matmul %1, %0, %cst {dimension_numbers = #tpu.dot_dimension_numbers<[1], [0], [0], [1], [0, 0, 1, 1], [], []>} : vector<14x14xf32>, vector<14x1024xf32>, vector<14x1024xf32> -> vector<14x1024xf32>
    %c0_3 = arith.constant 0 : index
    %c0_4 = arith.constant 0 : index
    %3 = vector.load %arg3[%c0_3, %c0_4] : memref<14x1xf32, #tpu.memory_space<vmem>>, vector<14x1xf32>
    %4 = vector.broadcast %3 : vector<14x1xf32> to vector<14x1024xf32>
    %5 = arith.addf %2, %4 : vector<14x1024xf32>
    %cst_5 = arith.constant dense<0.000000e+00> : vector<1024xf32>
    %6 = vector.multi_reduction <add>, %5, %cst_5 [0] : vector<14x1024xf32> to vector<1024xf32>
    %7 = vector.shape_cast %6 : vector<1024xf32> to vector<1x1024xf32>
    %cst_6 = arith.constant 1.400000e+01 : f32
    %8 = vector.broadcast %cst_6 : f32 to vector<1x1024xf32>
    %9 = arith.divf %7, %8 : vector<1x1024xf32>
    %10 = vector.broadcast %9 : vector<1x1024xf32> to vector<14x1024xf32>
    %11 = arith.subf %5, %10 : vector<14x1024xf32>
    %12 = arith.mulf %11, %11 : vector<14x1024xf32>
    %cst_7 = arith.constant dense<0.000000e+00> : vector<1024xf32>
    %13 = vector.multi_reduction <add>, %12, %cst_7 [0] : vector<14x1024xf32> to vector<1024xf32>
    %14 = vector.shape_cast %13 : vector<1024xf32> to vector<1x1024xf32>
    %cst_8 = arith.constant 1.400000e+01 : f32
    %15 = vector.broadcast %cst_8 : f32 to vector<1x1024xf32>
    %16 = arith.divf %14, %15 : vector<1x1024xf32>
    %cst_9 = arith.constant 9.99999974E-6 : f32
    %17 = vector.broadcast %cst_9 : f32 to vector<1x1024xf32>
    %18 = arith.addf %16, %17 : vector<1x1024xf32>
    %19 = math.rsqrt %18 : vector<1x1024xf32>
    %20 = vector.broadcast %19 : vector<1x1024xf32> to vector<14x1024xf32>
    %21 = arith.mulf %11, %20 : vector<14x1024xf32>
    %c0_10 = arith.constant 0 : index
    %c0_11 = arith.constant 0 : index
    %22 = vector.load %arg4[%c0_10, %c0_11] : memref<14x1xf32, #tpu.memory_space<vmem>>, vector<14x1xf32>
    %23 = vector.broadcast %22 : vector<14x1xf32> to vector<14x1024xf32>
    %24 = arith.mulf %21, %23 : vector<14x1024xf32>
    %c0_12 = arith.constant 0 : index
    %c0_13 = arith.constant 0 : index
    %25 = vector.load %arg5[%c0_12, %c0_13] : memref<14x1xf32, #tpu.memory_space<vmem>>, vector<14x1xf32>
    %26 = vector.broadcast %25 : vector<14x1xf32> to vector<14x1024xf32>
    %27 = arith.addf %24, %26 : vector<14x1024xf32>
    %c0_14 = arith.constant 0 : index
    %c0_15 = arith.constant 0 : index
    %28 = vector.load %arg6[%c0_14, %c0_15] : memref<14x1024xf32, #tpu.memory_space<vmem>>, vector<14x1024xf32>
    tpu.vector_store %arg6[%c0_14, %c0_15], %27 {strides = array<i32>} : memref<14x1024xf32, #tpu.memory_space<vmem>>, vector<14x1024xf32>,
    return
  }
  func.func @transform_0(%arg0: i32) -> (i32, i32) {
    %c0_i32 = arith.constant 0 : i32
    %c0_i32_0 = arith.constant 0 : i32
    return %c0_i32, %arg0 : i32, i32
  }
  func.func @transform_1(%arg0: i32) -> (i32, i32) {
    %c0_i32 = arith.constant 0 : i32
    %c0_i32_0 = arith.constant 0 : i32
    %c0_i32_1 = arith.constant 0 : i32
    return %c0_i32, %c0_i32_0 : i32, i32
  }
  func.func @transform_2(%arg0: i32) -> (i32, i32) {
    %c0_i32 = arith.constant 0 : i32
    %c0_i32_0 = arith.constant 0 : i32
    %c0_i32_1 = arith.constant 0 : i32
    return %c0_i32, %c0_i32_0 : i32, i32
  }
  func.func @transform_3(%arg0: i32) -> (i32, i32) {
    %c0_i32 = arith.constant 0 : i32
    %c0_i32_0 = arith.constant 0 : i32
    %c0_i32_1 = arith.constant 0 : i32
    return %c0_i32, %c0_i32_0 : i32, i32
  }
  func.func @transform_4(%arg0: i32) -> (i32, i32) {
    %c0_i32 = arith.constant 0 : i32
    %c0_i32_0 = arith.constant 0 : i32
    %c0_i32_1 = arith.constant 0 : i32
    return %c0_i32, %c0_i32_0 : i32, i32
  }
  func.func @transform_5(%arg0: i32) -> (i32, i32) {
    %c0_i32 = arith.constant 0 : i32
    %c0_i32_0 = arith.constant 0 : i32
    return %c0_i32, %arg0 : i32, i32
  }
}

</mosaic_0001>

<llo_original>
// kernel: tpu_custom_call.1
$region0: #{tpu_custom_call.1}
  #allocation0 [shape = 'u32[]', space=smem, size = 0x4, offset = 0x4, fixed_abs, tag = 'smem constant byte address 0x4 - core index']
  #allocation1 [shape = 'u32[144,128]{1,0:T(1,128)}', space=vmem, size = 0x12000, scoped, tag = 'internal scratch']
  %s0 = inlined_call_operand.hbm [shape: f32[14,1024], index: 0, kind: input, shape index: {}]
  %s1 = inlined_call_operand.vmem [shape: f32[14,14], index: 1, kind: input, shape index: {}]
  %s2 = inlined_call_operand.vmem [shape: f32[14,1], index: 2, kind: input, shape index: {}]
  %s3 = inlined_call_operand.vmem [shape: f32[14,1], index: 3, kind: input, shape index: {}]
  %s4 = inlined_call_operand.vmem [shape: f32[14,1], index: 4, kind: input, shape index: {}]
  %s5 = inlined_call_operand.hbm [shape: f32[14,1024], index: 5, kind: output, shape index: {}]
  %s6 = sld [smem:[#allocation0]]
  $region34: #{tpu_custom_call.1} parent=0
    _
  %s8 = ssub.s32 1, %s6
  %s9 = scalar_select 0, %s8, %s6
  $region1: #{tpu_custom_call.1} parent=0
    #allocation2 [shape = 'u8[65536]{0}', space=vmem, size = 0x10000, scoped, tag = 'input window, operand 0, single buffered']
    #allocation3 [shape = 's32[1]{0}', space=sflag, size = 0x4, scoped, tag = 'scoped memory for tpu_custom_call.1']
    #allocation4 [shape = 's32[1]{0}', space=sflag, size = 0x4, scoped, tag = 'scoped memory for tpu_custom_call.1']
    #allocation5 [shape = 'u8[65536]{0}', space=vmem, size = 0x10000, scoped, tag = 'output window, operand 0, single buffered']
    %10 = vsyncpa [#allocation3], 0
    %11 = vsyncpa [#allocation4], 0
    // Predicated region
    $region2: #{tpu_custom_call.1} parent=1 // pred_check
      _
    $region3: #{tpu_custom_call.1} parent=1 // pred_check_branch
      %13 = sbr.rel (0) target = $region5
    $region4: #{tpu_custom_call.1} parent=1 // pred_region
      %s15 = ssub.s32 2048, 2048
      %16 = vsyncadd [#allocation3], %s15
      %s17 = sshll.u32 [#allocation2], 4
      %s18 = int_to_ptr.vmem [resolvable:$true] %s17
      %23 = dma.hbm_to_vmem [thread:$0]  %s0, 2048, %s18, [#allocation3], 1024, 1024, 64
    $region5: #{tpu_custom_call.1} parent=1 // pred_fallthru
      _
    // Predicated region
    $region6: #{tpu_custom_call.1} parent=1 // pred_check
      _
    $region7: #{tpu_custom_call.1} parent=1 // pred_check_branch
      %25 = sbr.rel (0) target = $region9
    $region8: #{tpu_custom_call.1} parent=1 // pred_region
      _
    $region9: #{tpu_custom_call.1} parent=1 // pred_fallthru
      _
    // Predicated region
    $region10: #{tpu_custom_call.1} parent=1 // pred_check
      _
    $region11: #{tpu_custom_call.1} parent=1 // pred_check_branch
      %27 = sbr.rel (0) target = $region13
    $region12: #{tpu_custom_call.1} parent=1 // pred_region
      _
    $region13: #{tpu_custom_call.1} parent=1 // pred_fallthru
      _
    // Predicated region
    $region14: #{tpu_custom_call.1} parent=1 // pred_check
      _
    $region15: #{tpu_custom_call.1} parent=1 // pred_check_branch
      %29 = sbr.rel (0) target = $region17
    $region16: #{tpu_custom_call.1} parent=1 // pred_region
      _
    $region17: #{tpu_custom_call.1} parent=1 // pred_fallthru
      _
    // Predicated region
    $region18: #{tpu_custom_call.1} parent=1 // pred_check
      _
    $region19: #{tpu_custom_call.1} parent=1 // pred_check_branch
      %31 = sbr.rel (0) target = $region21
    $region20: #{tpu_custom_call.1} parent=1 // pred_region
      _
    $region21: #{tpu_custom_call.1} parent=1 // pred_fallthru
      _
    // Predicated region
    $region22: #{tpu_custom_call.1} parent=1 // pred_check
      _
    $region23: #{tpu_custom_call.1} parent=1 // pred_check_branch
      %33 = sbr.rel (0) target = $region25
    $region24: #{tpu_custom_call.1} parent=1 // pred_region
      %34 = dma.done [#allocation3], 2048
    $region25: #{tpu_custom_call.1} parent=1 // pred_fallthru
      _
    %v35 = vld [vmem:[#allocation2] sm:$0xff]
    %v36 = vld [vmem:[#allocation2 + $0x8] sm:$0xff]
    %v37 = vld [vmem:[#allocation2 + $0x10] sm:$0xff]
    %v38 = vld [vmem:[#allocation2 + $0x18] sm:$0xff]
    %v39 = vld [vmem:[#allocation2 + $0x20] sm:$0xff]
    %v40 = vld [vmem:[#allocation2 + $0x28] sm:$0xff]
    %v41 = vld [vmem:[#allocation2 + $0x30] sm:$0xff]
    %v42 = vld [vmem:[#allocation2 + $0x38] sm:$0xff]
    %v43 = vld [vmem:[#allocation2 + $0x40] sm:$0x3f]
    %v44 = vld [vmem:[#allocation2 + $0x48] sm:$0x3f]
    %v45 = vld [vmem:[#allocation2 + $0x50] sm:$0x3f]
    %v46 = vld [vmem:[#allocation2 + $0x58] sm:$0x3f]
    %v47 = vld [vmem:[#allocation2 + $0x60] sm:$0x3f]
    %v48 = vld [vmem:[#allocation2 + $0x68] sm:$0x3f]
    %v49 = vld [vmem:[#allocation2 + $0x70] sm:$0x3f]
    %v50 = vld [vmem:[#allocation2 + $0x78] sm:$0x3f]
    %v51 = vld [vmem:[%s1] sm:$0xff]
    %v52 = vld [vmem:[%s1 + $0x8] sm:$0x3f]
    %v53 = vld [vmem:[%s2] sm:$0xff]
    %v54 = vld [vmem:[%s2 + $0x8] sm:$0x3f]
    %56 = vset.pattern.permute.xlu0 0
    %57 = vperm.xlu0 %56, %v53
    %v58 = vpop.permute.xlu0 %57
    %61 = vset.pattern.permute.xlu0 0
    %62 = vperm.xlu0 %61, %v54
    %v63 = vpop.permute.xlu0 %62
    %vm65 = vcmask 113664
    %v67 = vsel %vm65, %v51, 0
    %v70 = vsel %vm65, %v52, 0
    %vm72 = vcmask 1045504
    %v74 = vsel %vm72, %v43, 0
    %v77 = vsel %vm72, %v44, 0
    %v80 = vsel %vm72, %v45, 0
    %v83 = vsel %vm72, %v46, 0
    %v86 = vsel %vm72, %v47, 0
    %v89 = vsel %vm72, %v48, 0
    %v92 = vsel %vm72, %v49, 0
    %v95 = vsel %vm72, %v50, 0
    %97 = vmatprep.subr.mxu0 0.0
    %98 = vmatpush1.msra.mxu0 0.0
    %99 = vmatprep.subr.mxu0 0.0
    %100 = vmatpush1.msra.mxu0 0.0
    %101 = vmatprep.subr.mxu0 0.0
    %102 = vmatpush1.msra.mxu0 0.0
    %103 = vmatprep.subr.mxu0 0.0
    %104 = vmatpush1.msra.mxu0 0.0
    %105 = vmatprep.subr.mxu0 0.0
    %106 = vmatpush1.msra.mxu0 0.0
    %107 = vmatprep.subr.mxu0 0.0
    %108 = vmatpush1.msra.mxu0 0.0
    %109 = vmatprep.subr.mxu0 0.0
    %110 = vmatpush1.msra.mxu0 0.0
    %111 = vmatprep.subr.mxu0 0.0
    %112 = vmatpush1.msra.mxu0 0.0
    %113 = vmatprep.subr.mxu0 0.0
    %114 = vmatpush1.msra.mxu0 0.0
    %115 = vmatprep.subr.mxu0 0.0
    %116 = vmatpush1.msra.mxu0 0.0
    %117 = vmatprep.subr.mxu0 0.0
    %118 = vmatpush1.msra.mxu0 0.0
    %119 = vmatprep.subr.mxu0 0.0
    %120 = vmatpush1.msra.mxu0 0.0
    %121 = vmatprep.subr.mxu0 0.0
    %122 = vmatpush1.msra.mxu0 0.0
    %123 = vmatprep.subr.mxu0 0.0
    %124 = vmatpush1.msra.mxu0 0.0
    %125 = vmatprep.subr.mxu0 %v77
    %126 = vmatpush1.msra.mxu0 %v74
    %127 = vmatprep.subr.mxu0 %v36
    %128 = vmatpush1.msra.mxu0 %v35
    %129 = vmatprep.subr.mxu0 0.0
    %130 = vmatpush2.msra.mxu0 0.0
    %131 = vmatprep.subr.mxu0 0.0
    %132 = vmatpush2.msra.mxu0 0.0
    %133 = vmatprep.subr.mxu0 0.0
    %134 = vmatpush2.msra.mxu0 0.0
    %135 = vmatprep.subr.mxu0 0.0
    %136 = vmatpush2.msra.mxu0 0.0
    %137 = vmatprep.subr.mxu0 0.0
    %138 = vmatpush2.msra.mxu0 0.0
    %139 = vmatprep.subr.mxu0 0.0
    %140 = vmatpush2.msra.mxu0 0.0
    %141 = vmatprep.subr.mxu0 0.0
    %142 = vmatpush2.msra.mxu0 0.0
    %143 = vmatprep.subr.mxu0 0.0
    %144 = vmatpush2.msra.mxu0 0.0
    %145 = vmatprep.subr.mxu0 0.0
    %146 = vmatpush2.msra.mxu0 0.0
    %147 = vmatprep.subr.mxu0 0.0
    %148 = vmatpush2.msra.mxu0 0.0
    %149 = vmatprep.subr.mxu0 0.0
    %150 = vmatpush2.msra.mxu0 0.0
    %151 = vmatprep.subr.mxu0 0.0
    %152 = vmatpush2.msra.mxu0 0.0
    %153 = vmatprep.subr.mxu0 0.0
    %154 = vmatpush2.msra.mxu0 0.0
    %155 = vmatprep.subr.mxu0 0.0
    %156 = vmatpush2.msra.mxu0 0.0
    %157 = vmatprep.subr.mxu0 0.0
    %158 = vmatpush2.msra.mxu0 0.0
    %159 = vmatprep.subr.mxu0 0.0
    %160 = vmatpush2.msra.mxu0 0.0
    %161 = vmatprep.mubr.f32.mxu0 0.0
    %162 = vmatmul.mubr.f32.gmra.mxu0 %v67
    %v163 = vpop.f32.mrf.mxu0
    %v164 = vadd.f32 %v58, %v163
    %v165 = vpop.f32.mrf.mxu0
    %v166 = vadd.f32 %v58, %v165
    %167 = vmatprep.mubr.f32.mxu0 0.0
    %168 = vmatmul.mubr.f32.gmra.mxu0 %v70
    %v169 = vpop.f32.mrf.mxu0
    %v170 = vadd.f32 %v63, %v169
    %v171 = vpop.f32.mrf.mxu0
    %v172 = vadd.f32 %v63, %v171
    %173 = vdwg.mxu0
    %174 = vmatprep.subr.mxu0 0.0
    %175 = vmatpush1.msra.mxu0 0.0
    %176 = vmatprep.subr.mxu0 0.0
    %177 = vmatpush1.msra.mxu0 0.0
    %178 = vmatprep.subr.mxu0 0.0
    %179 = vmatpush1.msra.mxu0 0.0
    %180 = vmatprep.subr.mxu0 0.0
    %181 = vmatpush1.msra.mxu0 0.0
    %182 = vmatprep.subr.mxu0 0.0
    %183 = vmatpush1.msra.mxu0 0.0
    %184 = vmatprep.subr.mxu0 0.0
    %185 = vmatpush1.msra.mxu0 0.0
    %186 = vmatprep.subr.mxu0 0.0
    %187 = vmatpush1.msra.mxu0 0.0
    %188 = vmatprep.subr.mxu0 0.0
    %189 = vmatpush1.msra.mxu0 0.0
    %190 = vmatprep.subr.mxu0 0.0
    %191 = vmatpush1.msra.mxu0 0.0
    %192 = vmatprep.subr.mxu0 0.0
    %193 = vmatpush1.msra.mxu0 0.0
    %194 = vmatprep.subr.mxu0 0.0
    %195 = vmatpush1.msra.mxu0 0.0
    %196 = vmatprep.subr.mxu0 0.0
    %197 = vmatpush1.msra.mxu0 0.0
    %198 = vmatprep.subr.mxu0 0.0
    %199 = vmatpush1.msra.mxu0 0.0
    %200 = vmatprep.subr.mxu0 0.0
    %201 = vmatpush1.msra.mxu0 0.0
    %202 = vmatprep.subr.mxu0 %v83
    %203 = vmatpush1.msra.mxu0 %v80
    %204 = vmatprep.subr.mxu0 %v38
    %205 = vmatpush1.msra.mxu0 %v37
    %206 = vmatprep.subr.mxu0 0.0
    %207 = vmatpush2.msra.mxu0 0.0
    %208 = vmatprep.subr.mxu0 0.0
    %209 = vmatpush2.msra.mxu0 0.0
    %210 = vmatprep.subr.mxu0 0.0
    %211 = vmatpush2.msra.mxu0 0.0
    %212 = vmatprep.subr.mxu0 0.0
    %213 = vmatpush2.msra.mxu0 0.0
    %214 = vmatprep.subr.mxu0 0.0
    %215 = vmatpush2.msra.mxu0 0.0
    %216 = vmatprep.subr.mxu0 0.0
    %217 = vmatpush2.msra.mxu0 0.0
    %218 = vmatprep.subr.mxu0 0.0
    %219 = vmatpush2.msra.mxu0 0.0
    %220 = vmatprep.subr.mxu0 0.0
    %221 = vmatpush2.msra.mxu0 0.0
    %222 = vmatprep.subr.mxu0 0.0
    %223 = vmatpush2.msra.mxu0 0.0
    %224 = vmatprep.subr.mxu0 0.0
    %225 = vmatpush2.msra.mxu0 0.0
    %226 = vmatprep.subr.mxu0 0.0
    %227 = vmatpush2.msra.mxu0 0.0
    %228 = vmatprep.subr.mxu0 0.0
    %229 = vmatpush2.msra.mxu0 0.0
    %230 = vmatprep.subr.mxu0 0.0
    %231 = vmatpush2.msra.mxu0 0.0
    %232 = vmatprep.subr.mxu0 0.0
    %233 = vmatpush2.msra.mxu0 0.0
    %234 = vmatprep.subr.mxu0 0.0
    %235 = vmatpush2.msra.mxu0 0.0
    %236 = vmatprep.subr.mxu0 0.0
    %237 = vmatpush2.msra.mxu0 0.0
    %238 = vmatprep.mubr.f32.mxu0 0.0
    %239 = vmatmul.mubr.f32.gmra.mxu0 %v67
    %v240 = vpop.f32.mrf.mxu0
    %v241 = vadd.f32 %v58, %v240
    %v242 = vpop.f32.mrf.mxu0
    %v243 = vadd.f32 %v58, %v242
    %244 = vmatprep.mubr.f32.mxu0 0.0
    %245 = vmatmul.mubr.f32.gmra.mxu0 %v70
    %v246 = vpop.f32.mrf.mxu0
    %v247 = vadd.f32 %v63, %v246
    %v248 = vpop.f32.mrf.mxu0
    %v249 = vadd.f32 %v63, %v248
    %250 = vdwg.mxu0
    %251 = vmatprep.subr.mxu0 0.0
    %252 = vmatpush1.msra.mxu0 0.0
    %253 = vmatprep.subr.mxu0 0.0
    %254 = vmatpush1.msra.mxu0 0.0
    %255 = vmatprep.subr.mxu0 0.0
    %256 = vmatpush1.msra.mxu0 0.0
    %257 = vmatprep.subr.mxu0 0.0
    %258 = vmatpush1.msra.mxu0 0.0
    %259 = vmatprep.subr.mxu0 0.0
    %260 = vmatpush1.msra.mxu0 0.0
    %261 = vmatprep.subr.mxu0 0.0
    %262 = vmatpush1.msra.mxu0 0.0
    %263 = vmatprep.subr.mxu0 0.0
    %264 = vmatpush1.msra.mxu0 0.0
    %265 = vmatprep.subr.mxu0 0.0
    %266 = vmatpush1.msra.mxu0 0.0
    %267 = vmatprep.subr.mxu0 0.0
    %268 = vmatpush1.msra.mxu0 0.0
    %269 = vmatprep.subr.mxu0 0.0
    %270 = vmatpush1.msra.mxu0 0.0
    %271 = vmatprep.subr.mxu0 0.0
    %272 = vmatpush1.msra.mxu0 0.0
    %273 = vmatprep.subr.mxu0 0.0
    %274 = vmatpush1.msra.mxu0 0.0
    %275 = vmatprep.subr.mxu0 0.0
    %276 = vmatpush1.msra.mxu0 0.0
    %277 = vmatprep.subr.mxu0 0.0
    %278 = vmatpush1.msra.mxu0 0.0
    %279 = vmatprep.subr.mxu0 %v89
    %280 = vmatpush1.msra.mxu0 %v86
    %281 = vmatprep.subr.mxu0 %v40
    %282 = vmatpush1.msra.mxu0 %v39
    %283 = vmatprep.subr.mxu0 0.0
    %284 = vmatpush2.msra.mxu0 0.0
    %285 = vmatprep.subr.mxu0 0.0
    %286 = vmatpush2.msra.mxu0 0.0
    %287 = vmatprep.subr.mxu0 0.0
    %288 = vmatpush2.msra.mxu0 0.0
    %289 = vmatprep.subr.mxu0 0.0
    %290 = vmatpush2.msra.mxu0 0.0
    %291 = vmatprep.subr.mxu0 0.0
    %292 = vmatpush2.msra.mxu0 0.0
    %293 = vmatprep.subr.mxu0 0.0
    %294 = vmatpush2.msra.mxu0 0.0
    %295 = vmatprep.subr.mxu0 0.0
    %296 = vmatpush2.msra.mxu0 0.0
    %297 = vmatprep.subr.mxu0 0.0
    %298 = vmatpush2.msra.mxu0 0.0
    %299 = vmatprep.subr.mxu0 0.0
    %300 = vmatpush2.msra.mxu0 0.0
    %301 = vmatprep.subr.mxu0 0.0
    %302 = vmatpush2.msra.mxu0 0.0
    %303 = vmatprep.subr.mxu0 0.0
    %304 = vmatpush2.msra.mxu0 0.0
    %305 = vmatprep.subr.mxu0 0.0
    %306 = vmatpush2.msra.mxu0 0.0
    %307 = vmatprep.subr.mxu0 0.0
    %308 = vmatpush2.msra.mxu0 0.0
    %309 = vmatprep.subr.mxu0 0.0
    %310 = vmatpush2.msra.mxu0 0.0
    %311 = vmatprep.subr.mxu0 0.0
    %312 = vmatpush2.msra.mxu0 0.0
    %313 = vmatprep.subr.mxu0 0.0
    %314 = vmatpush2.msra.mxu0 0.0
    %315 = vmatprep.mubr.f32.mxu0 0.0
    %316 = vmatmul.mubr.f32.gmra.mxu0 %v67
    %v317 = vpop.f32.mrf.mxu0
    %v318 = vadd.f32 %v58, %v317
    %v319 = vpop.f32.mrf.mxu0
    %v320 = vadd.f32 %v58, %v319
    %321 = vmatprep.mubr.f32.mxu0 0.0
    %322 = vmatmul.mubr.f32.gmra.mxu0 %v70
    %v323 = vpop.f32.mrf.mxu0
    %v324 = vadd.f32 %v63, %v323
    %v325 = vpop.f32.mrf.mxu0
    %v326 = vadd.f32 %v63, %v325
    %327 = vdwg.mxu0
    %328 = vmatprep.subr.mxu0 0.0
    %329 = vmatpush1.msra.mxu0 0.0
    %330 = vmatprep.subr.mxu0 0.0
    %331 = vmatpush1.msra.mxu0 0.0
    %332 = vmatprep.subr.mxu0 0.0
    %333 = vmatpush1.msra.mxu0 0.0
    %334 = vmatprep.subr.mxu0 0.0
    %335 = vmatpush1.msra.mxu0 0.0
    %336 = vmatprep.subr.mxu0 0.0
    %337 = vmatpush1.msra.mxu0 0.0
    %338 = vmatprep.subr.mxu0 0.0
    %339 = vmatpush1.msra.mxu0 0.0
    %340 = vmatprep.subr.mxu0 0.0
    %341 = vmatpush1.msra.mxu0 0.0
    %342 = vmatprep.subr.mxu0 0.0
    %343 = vmatpush1.msra.mxu0 0.0
    %344 = vmatprep.subr.mxu0 0.0
    %345 = vmatpush1.msra.mxu0 0.0
    %346 = vmatprep.subr.mxu0 0.0
    %347 = vmatpush1.msra.mxu0 0.0
    %348 = vmatprep.subr.mxu0 0.0
    %349 = vmatpush1.msra.mxu0 0.0
    %350 = vmatprep.subr.mxu0 0.0
    %351 = vmatpush1.msra.mxu0 0.0
    %352 = vmatprep.subr.mxu0 0.0
    %353 = vmatpush1.msra.mxu0 0.0
    %354 = vmatprep.subr.mxu0 0.0
    %355 = vmatpush1.msra.mxu0 0.0
    %356 = vmatprep.subr.mxu0 %v95
    %357 = vmatpush1.msra.mxu0 %v92
    %358 = vmatprep.subr.mxu0 %v42
    %359 = vmatpush1.msra.mxu0 %v41
    %360 = vmatprep.subr.mxu0 0.0
    %361 = vmatpush2.msra.mxu0 0.0
    %362 = vmatprep.subr.mxu0 0.0
    %363 = vmatpush2.msra.mxu0 0.0
    %364 = vmatprep.subr.mxu0 0.0
    %365 = vmatpush2.msra.mxu0 0.0
    %366 = vmatprep.subr.mxu0 0.0
    %367 = vmatpush2.msra.mxu0 0.0
    %368 = vmatprep.subr.mxu0 0.0
    %369 = vmatpush2.msra.mxu0 0.0
    %370 = vmatprep.subr.mxu0 0.0
    %371 = vmatpush2.msra.mxu0 0.0
    %372 = vmatprep.subr.mxu0 0.0
    %373 = vmatpush2.msra.mxu0 0.0
    %374 = vmatprep.subr.mxu0 0.0
    %375 = vmatpush2.msra.mxu0 0.0
    %376 = vmatprep.subr.mxu0 0.0
    %377 = vmatpush2.msra.mxu0 0.0
    %378 = vmatprep.subr.mxu0 0.0
    %379 = vmatpush2.msra.mxu0 0.0
    %380 = vmatprep.subr.mxu0 0.0
    %381 = vmatpush2.msra.mxu0 0.0
    %382 = vmatprep.subr.mxu0 0.0
    %383 = vmatpush2.msra.mxu0 0.0
    %384 = vmatprep.subr.mxu0 0.0
    %385 = vmatpush2.msra.mxu0 0.0
    %386 = vmatprep.subr.mxu0 0.0
    %387 = vmatpush2.msra.mxu0 0.0
    %388 = vmatprep.subr.mxu0 0.0
    %389 = vmatpush2.msra.mxu0 0.0
    %390 = vmatprep.subr.mxu0 0.0
    %391 = vmatpush2.msra.mxu0 0.0
    %392 = vmatprep.mubr.f32.mxu0 0.0
    %393 = vmatmul.mubr.f32.gmra.mxu0 %v67
    %v394 = vpop.f32.mrf.mxu0
    %v395 = vadd.f32 %v58, %v394
    %v396 = vpop.f32.mrf.mxu0
    %v397 = vadd.f32 %v58, %v396
    %398 = vmatprep.mubr.f32.mxu0 0.0
    %399 = vmatmul.mubr.f32.gmra.mxu0 %v70
    %v400 = vpop.f32.mrf.mxu0
    %v401 = vadd.f32 %v63, %v400
    %v402 = vpop.f32.mrf.mxu0
    %v403 = vadd.f32 %v63, %v402
    %404 = vdwg.mxu0
    %v405 = vsel %vm72, %v170, 0.0
    %v406 = vadd.f32 %v164, %v405
    %v407 = vrot.slane %v406, 4
    %v408 = vadd.f32 %v406, %v407
    %v409 = vrot.slane %v408, 2
    %v410 = vadd.f32 %v408, %v409
    %v411 = vrot.slane %v410, 1
    %v412 = vadd.f32 %v410, %v411
    %v413 = vsel %vm72, %v172, 0.0
    %v414 = vadd.f32 %v166, %v413
    %v415 = vrot.slane %v414, 4
    %v416 = vadd.f32 %v414, %v415
    %v417 = vrot.slane %v416, 2
    %v418 = vadd.f32 %v416, %v417
    %v419 = vrot.slane %v418, 1
    %v420 = vadd.f32 %v418, %v419
    %v421 = vsel %vm72, %v247, 0.0
    %v422 = vadd.f32 %v241, %v421
    %v423 = vrot.slane %v422, 4
    %v424 = vadd.f32 %v422, %v423
    %v425 = vrot.slane %v424, 2
    %v426 = vadd.f32 %v424, %v425
    %v427 = vrot.slane %v426, 1
    %v428 = vadd.f32 %v426, %v427
    %v429 = vsel %vm72, %v249, 0.0
    %v430 = vadd.f32 %v243, %v429
    %v431 = vrot.slane %v430, 4
    %v432 = vadd.f32 %v430, %v431
    %v433 = vrot.slane %v432, 2
    %v434 = vadd.f32 %v432, %v433
    %v435 = vrot.slane %v434, 1
    %v436 = vadd.f32 %v434, %v435
    %v437 = vsel %vm72, %v324, 0.0
    %v438 = vadd.f32 %v318, %v437
    %v439 = vrot.slane %v438, 4
    %v440 = vadd.f32 %v438, %v439
    %v441 = vrot.slane %v440, 2
    %v442 = vadd.f32 %v440, %v441
    %v443 = vrot.slane %v442, 1
    %v444 = vadd.f32 %v442, %v443
    %v445 = vsel %vm72, %v326, 0.0
    %v446 = vadd.f32 %v320, %v445
    %v447 = vrot.slane %v446, 4
    %v448 = vadd.f32 %v446, %v447
    %v449 = vrot.slane %v448, 2
    %v450 = vadd.f32 %v448, %v449
    %v451 = vrot.slane %v450, 1
    %v452 = vadd.f32 %v450, %v451
    %v453 = vsel %vm72, %v401, 0.0
    %v454 = vadd.f32 %v395, %v453
    %v455 = vrot.slane %v454, 4
    %v456 = vadd.f32 %v454, %v455
    %v457 = vrot.slane %v456, 2
    %v458 = vadd.f32 %v456, %v457
    %v459 = vrot.slane %v458, 1
    %v460 = vadd.f32 %v458, %v459
    %v461 = vsel %vm72, %v403, 0.0
    %v462 = vadd.f32 %v397, %v461
    %v463 = vrot.slane %v462, 4
    %v464 = vadd.f32 %v462, %v463
    %v465 = vrot.slane %v464, 2
    %v466 = vadd.f32 %v464, %v465
    %v467 = vrot.slane %v466, 1
    %v468 = vadd.f32 %v466, %v467
    %v469 = vrcp.pop 14.0
    %v470 = vmul.f32 %v412, %v469
    %v471 = vmul.f32 %v420, %v469
    %v472 = vmul.f32 %v428, %v469
    %v473 = vmul.f32 %v436, %v469
    %v474 = vmul.f32 %v444, %v469
    %v475 = vmul.f32 %v452, %v469
    %v476 = vmul.f32 %v460, %v469
    %v477 = vmul.f32 %v468, %v469
    %v478 = vsub.f32 %v164, %v470
    %v479 = vsub.f32 %v166, %v471
    %v480 = vsub.f32 %v241, %v472
    %v481 = vsub.f32 %v243, %v473
    %v482 = vsub.f32 %v318, %v474
    %v483 = vsub.f32 %v320, %v475
    %v484 = vsub.f32 %v395, %v476
    %v485 = vsub.f32 %v397, %v477
    %v486 = vsub.f32 %v170, %v470
    %v487 = vsub.f32 %v172, %v471
    %v488 = vsub.f32 %v247, %v472
    %v489 = vsub.f32 %v249, %v473
    %v490 = vsub.f32 %v324, %v474
    %v491 = vsub.f32 %v326, %v475
    %v492 = vsub.f32 %v401, %v476
    %v493 = vsub.f32 %v403, %v477
    %v494 = vmul.f32 %v478, %v478
    %v495 = vmul.f32 %v479, %v479
    %v496 = vmul.f32 %v480, %v480
    %v497 = vmul.f32 %v481, %v481
    %v498 = vmul.f32 %v482, %v482
    %v499 = vmul.f32 %v483, %v483
    %v500 = vmul.f32 %v484, %v484
    %v501 = vmul.f32 %v485, %v485
    %v502 = vmul.f32 %v486, %v486
    %v503 = vmul.f32 %v487, %v487
    %v504 = vmul.f32 %v488, %v488
    %v505 = vmul.f32 %v489, %v489
    %v506 = vmul.f32 %v490, %v490
    %v507 = vmul.f32 %v491, %v491
    %v508 = vmul.f32 %v492, %v492
    %v509 = vmul.f32 %v493, %v493
    %v510 = vsel %vm72, %v502, 0.0
    %v511 = vadd.f32 %v494, %v510
    %v512 = vrot.slane %v511, 4
    %v513 = vadd.f32 %v511, %v512
    %v514 = vrot.slane %v513, 2
    %v515 = vadd.f32 %v513, %v514
    %v516 = vrot.slane %v515, 1
    %v517 = vadd.f32 %v515, %v516
    %v518 = vsel %vm72, %v503, 0.0
    %v519 = vadd.f32 %v495, %v518
    %v520 = vrot.slane %v519, 4
    %v521 = vadd.f32 %v519, %v520
    %v522 = vrot.slane %v521, 2
    %v523 = vadd.f32 %v521, %v522
    %v524 = vrot.slane %v523, 1
    %v525 = vadd.f32 %v523, %v524
    %v526 = vsel %vm72, %v504, 0.0
    %v527 = vadd.f32 %v496, %v526
    %v528 = vrot.slane %v527, 4
    %v529 = vadd.f32 %v527, %v528
    %v530 = vrot.slane %v529, 2
    %v531 = vadd.f32 %v529, %v530
    %v532 = vrot.slane %v531, 1
    %v533 = vadd.f32 %v531, %v532
    %v534 = vsel %vm72, %v505, 0.0
    %v535 = vadd.f32 %v497, %v534
    %v536 = vrot.slane %v535, 4
    %v537 = vadd.f32 %v535, %v536
    %v538 = vrot.slane %v537, 2
    %v539 = vadd.f32 %v537, %v538
    %v540 = vrot.slane %v539, 1
    %v541 = vadd.f32 %v539, %v540
    %v542 = vsel %vm72, %v506, 0.0
    %v543 = vadd.f32 %v498, %v542
    %v544 = vrot.slane %v543, 4
    %v545 = vadd.f32 %v543, %v544
    %v546 = vrot.slane %v545, 2
    %v547 = vadd.f32 %v545, %v546
    %v548 = vrot.slane %v547, 1
    %v549 = vadd.f32 %v547, %v548
    %v550 = vsel %vm72, %v507, 0.0
    %v551 = vadd.f32 %v499, %v550
    %v552 = vrot.slane %v551, 4
    %v553 = vadd.f32 %v551, %v552
    %v554 = vrot.slane %v553, 2
    %v555 = vadd.f32 %v553, %v554
    %v556 = vrot.slane %v555, 1
    %v557 = vadd.f32 %v555, %v556
    %v558 = vsel %vm72, %v508, 0.0
    %v559 = vadd.f32 %v500, %v558
    %v560 = vrot.slane %v559, 4
    %v561 = vadd.f32 %v559, %v560
    %v562 = vrot.slane %v561, 2
    %v563 = vadd.f32 %v561, %v562
    %v564 = vrot.slane %v563, 1
    %v565 = vadd.f32 %v563, %v564
    %v566 = vsel %vm72, %v509, 0.0
    %v567 = vadd.f32 %v501, %v566
    %v568 = vrot.slane %v567, 4
    %v569 = vadd.f32 %v567, %v568
    %v570 = vrot.slane %v569, 2
    %v571 = vadd.f32 %v569, %v570
    %v572 = vrot.slane %v571, 1
    %v573 = vadd.f32 %v571, %v572
    %v574 = vmul.f32 %v517, %v469
    %v575 = vmul.f32 %v525, %v469
    %v576 = vmul.f32 %v533, %v469
    %v577 = vmul.f32 %v541, %v469
    %v578 = vmul.f32 %v549, %v469
    %v579 = vmul.f32 %v557, %v469
    %v580 = vmul.f32 %v565, %v469
    %v581 = vmul.f32 %v573, %v469
    %v582 = vadd.f32 %v574, 1e-05
    %v583 = vadd.f32 %v575, 1e-05
    %v584 = vadd.f32 %v576, 1e-05
    %v585 = vadd.f32 %v577, 1e-05
    %v586 = vadd.f32 %v578, 1e-05
    %v587 = vadd.f32 %v579, 1e-05
    %v588 = vadd.f32 %v580, 1e-05
    %v589 = vadd.f32 %v581, 1e-05
    %v590 = vrsqrt.pop %v582
    %v591 = vrsqrt.pop %v583
    %v592 = vrsqrt.pop %v584
    %v593 = vrsqrt.pop %v585
    %v594 = vrsqrt.pop %v586
    %v595 = vrsqrt.pop %v587
    %v596 = vrsqrt.pop %v588
    %v597 = vrsqrt.pop %v589
    %v598 = vmul.f32 %v478, %v590
    %v599 = vmul.f32 %v479, %v591
    %v600 = vmul.f32 %v480, %v592
    %v601 = vmul.f32 %v481, %v593
    %v602 = vmul.f32 %v482, %v594
    %v603 = vmul.f32 %v483, %v595
    %v604 = vmul.f32 %v484, %v596
    %v605 = vmul.f32 %v485, %v597
    %v606 = vmul.f32 %v486, %v590
    %v607 = vmul.f32 %v487, %v591
    %v608 = vmul.f32 %v488, %v592
    %v609 = vmul.f32 %v489, %v593
    %v610 = vmul.f32 %v490, %v594
    %v611 = vmul.f32 %v491, %v595
    %v612 = vmul.f32 %v492, %v596
    %v613 = vmul.f32 %v493, %v597
    %v614 = vld [vmem:[%s3] sm:$0xff]
    %v615 = vld [vmem:[%s3 + $0x8] sm:$0x3f]
    %617 = vset.pattern.permute.xlu0 0
    %618 = vperm.xlu0 %617, %v614
    %v619 = vpop.permute.xlu0 %618
    %622 = vset.pattern.permute.xlu0 0
    %623 = vperm.xlu0 %622, %v615
    %v624 = vpop.permute.xlu0 %623
    %v626 = vmul.f32 %v598, %v619
    %v627 = vmul.f32 %v599, %v619
    %v628 = vmul.f32 %v600, %v619
    %v629 = vmul.f32 %v601, %v619
    %v630 = vmul.f32 %v602, %v619
    %v631 = vmul.f32 %v603, %v619
    %v632 = vmul.f32 %v604, %v619
    %v633 = vmul.f32 %v605, %v619
    %v634 = vmul.f32 %v606, %v624
    %v635 = vmul.f32 %v607, %v624
    %v636 = vmul.f32 %v608, %v624
    %v637 = vmul.f32 %v609, %v624
    %v638 = vmul.f32 %v610, %v624
    %v639 = vmul.f32 %v611, %v624
    %v640 = vmul.f32 %v612, %v624
    %v641 = vmul.f32 %v613, %v624
    %v642 = vld [vmem:[%s4] sm:$0xff]
    %v643 = vld [vmem:[%s4 + $0x8] sm:$0x3f]
    %645 = vset.pattern.permute.xlu0 0
    %646 = vperm.xlu0 %645, %v642
    %v647 = vpop.permute.xlu0 %646
    %650 = vset.pattern.permute.xlu0 0
    %651 = vperm.xlu0 %650, %v643
    %v652 = vpop.permute.xlu0 %651
    %v654 = vadd.f32 %v626, %v647
    %v655 = vadd.f32 %v627, %v647
    %v656 = vadd.f32 %v628, %v647
    %v657 = vadd.f32 %v629, %v647
    %v658 = vadd.f32 %v630, %v647
    %v659 = vadd.f32 %v631, %v647
    %v660 = vadd.f32 %v632, %v647
    %v661 = vadd.f32 %v633, %v647
    %v662 = vadd.f32 %v634, %v652
    %v663 = vadd.f32 %v635, %v652
    %v664 = vadd.f32 %v636, %v652
    %v665 = vadd.f32 %v637, %v652
    %v666 = vadd.f32 %v638, %v652
    %v667 = vadd.f32 %v639, %v652
    %v668 = vadd.f32 %v640, %v652
    %v669 = vadd.f32 %v641, %v652
    %670 = vst [vmem:[#allocation5] sm:$0xff] %v654
    %671 = vst [vmem:[#allocation5 + $0x8] sm:$0xff] %v655
    %672 = vst [vmem:[#allocation5 + $0x10] sm:$0xff] %v656
    %673 = vst [vmem:[#allocation5 + $0x18] sm:$0xff] %v657
    %674 = vst [vmem:[#allocation5 + $0x20] sm:$0xff] %v658
    %675 = vst [vmem:[#allocation5 + $0x28] sm:$0xff] %v659
    %676 = vst [vmem:[#allocation5 + $0x30] sm:$0xff] %v660
    %677 = vst [vmem:[#allocation5 + $0x38] sm:$0xff] %v661
    %678 = vst [vmem:[#allocation5 + $0x40] sm:$0x3f] %v662
    %679 = vst [vmem:[#allocation5 + $0x48] sm:$0x3f] %v663
    %680 = vst [vmem:[#allocation5 + $0x50] sm:$0x3f] %v664
    %681 = vst [vmem:[#allocation5 + $0x58] sm:$0x3f] %v665
    %682 = vst [vmem:[#allocation5 + $0x60] sm:$0x3f] %v666
    %683 = vst [vmem:[#allocation5 + $0x68] sm:$0x3f] %v667
    %684 = vst [vmem:[#allocation5 + $0x70] sm:$0x3f] %v668
    %685 = vst [vmem:[#allocation5 + $0x78] sm:$0x3f] %v669
    // Predicated region
    $region26: #{tpu_custom_call.1} parent=1 // pred_check
      _
    $region27: #{tpu_custom_call.1} parent=1 // pred_check_branch
      %687 = sbr.rel (0) target = $region29
    $region28: #{tpu_custom_call.1} parent=1 // pred_region
      %s689 = ssub.s32 2048, 2048
      %690 = vsyncadd [#allocation4], %s689
      %s691 = sshll.u32 [#allocation5], 4
      %s692 = int_to_ptr.vmem [resolvable:$true] %s691
      %697 = dma.vmem_to_hbm [thread:$0]  %s692, 2048, %s5, [#allocation4], 1024, 1024, 64
    $region29: #{tpu_custom_call.1} parent=1 // pred_fallthru
      _
    // Predicated region
    $region30: #{tpu_custom_call.1} parent=1 // pred_check
      _
    $region31: #{tpu_custom_call.1} parent=1 // pred_check_branch
      %699 = sbr.rel (0) target = $region33
    $region32: #{tpu_custom_call.1} parent=1 // pred_region
      %700 = dma.done [#allocation4], 2048
    $region33: #{tpu_custom_call.1} parent=1 // pred_fallthru
      _
    %701 = vsyncpa [#allocation3], 1
    %702 = vsyncpa [#allocation4], 1

</llo_original>
